<compile_context>
chip_gen: v6e
topology: v6e:2x2x1
jax: 0.10.0
libtpu: 0.0.40
codegen_flags: <defaults>
</compile_context>

<pallas_src>
import functools

import jax
import jax.numpy as jnp
from jax import lax
from jax.experimental import pallas as pl
from jax.experimental.pallas import tpu as pltpu


def _statistical_measures_kernel(x_ref, xmm_ref, fb_ref,
                                 scal_ref, cdf_ref, hist_ref, *,
                                 n_samples, n_bins, mean_orders, n_scalar_rows):
    """Fused statistics over one lane tile of features.

    x_ref    : (N, FT)        raw data (channel dim squeezed)
    xmm_ref  : (N, FT)        min-max normalized data (for CDF / histogram)
    fb_ref   : (1, 1)  SMEM   histogram first-bin value = cdf[bin 0, feature 0]
    scal_ref : (n_scalar_rows, FT)  mean, moments, median, std, mad (+ zero pad rows)
    cdf_ref  : (n_bins, FT)   empirical CDF
    hist_ref : (n_bins, FT)   histogram (first bin + diff of CDF)
    """
    n = n_samples
    inv_n = 1.0 / n
    ft = x_ref.shape[1]
    n_stats = 1 + len(mean_orders) + 3

    x = x_ref[...]                                            # (N, FT) f32

    # ---------------- scalar stats: store each row as soon as it is ready ------
    mean = jnp.sum(x, axis=0, keepdims=True) * inv_n          # (1, FT)
    scal_ref[0:1, :] = mean

    # higher-order moments, reusing powers (x2 = x*x, x3 = x2*x, ...)
    max_order = max(mean_orders) if mean_orders else 1
    pow_cache = [None, x]                                     # pow_cache[k] = x**k
    for k in range(2, max_order + 1):
        pow_cache.append(pow_cache[k - 1] * x)
    r = 1
    for order in mean_orders:
        scal_ref[r:r + 1, :] = jnp.sum(pow_cache[order], axis=0, keepdims=True) * inv_n
        r += 1

    med_row = 1 + len(mean_orders)
    centered = x - mean
    var_unbiased = jnp.sum(centered * centered, axis=0, keepdims=True) * (1.0 / (n - 1))
    scal_ref[med_row + 1:med_row + 2, :] = jnp.sqrt(var_unbiased)        # torch unbiased std
    scal_ref[med_row + 2:med_row + 3, :] = (
        jnp.sum(jnp.abs(centered), axis=0, keepdims=True) * inv_n)       # MAD

    if n_scalar_rows > n_stats:                               # deterministic pad rows
        scal_ref[n_stats:n_scalar_rows, :] = jnp.zeros(
            (n_scalar_rows - n_stats, ft), jnp.float32)

    # ---------------- median: whole-vreg odd-even transposition sort ----------
    # Per pass: 2 sublane rolls (XLU) + min/max + 2 selects on the full (N, FT) tile,
    # instead of N single-sublane row slices.  Masks are hoisted (no broadcast CSE).
    ridx = lax.broadcasted_iota(jnp.int32, (n, ft), 0)
    par = ridx & 1
    not_last = ridx <= (n - 2)
    left_m = [(par == 0) & not_last, (par == 1) & not_last]           # by pass parity
    right_m = [(par == 1) & (ridx >= 1), (par == 0) & (ridx >= 2)]

    xs = x
    for p in range(n):
        q = p & 1
        nxt = pltpu.roll(xs, n - 1, axis=0)       # nxt[i] = xs[(i+1) % n]
        prv = pltpu.roll(xs, 1, axis=0)           # prv[i] = xs[(i-1) % n]
        xs = jnp.where(left_m[q], jnp.minimum(xs, nxt),
                       jnp.where(right_m[q], jnp.maximum(xs, prv), xs))
    scal_ref[med_row:med_row + 1, :] = xs[(n - 1) // 2:(n - 1) // 2 + 1, :]  # lower median

    # ---------------- empirical CDF of x_minmax --------------------------------
    # Thresholds built in-kernel, lane-dense, hoisted once (no input DMA, no
    # re-broadcast per iteration).  Last threshold forced to exactly 1.0 so samples
    # equal to the per-feature max (exact 1.0 after min-max) land in the last bin,
    # matching torch.linspace(0, 1, n_bins).
    bidx = lax.broadcasted_iota(jnp.int32, (n_bins, ft), 0)
    step = 1.0 / (n_bins - 1) if n_bins > 1 else 0.0
    thr = bidx.astype(jnp.float32) * step
    thr = jnp.where(bidx == (n_bins - 1), 1.0, thr)

    # The dominant VALU loop: per sample one compare + one select-accumulate on the
    # (n_bins, FT) tile; the sample row (1, FT) keeps a replicated sublane layout.
    # (A stride-0 broadcast load `xmm_ref[pl.ds(i, n_bins, stride=0), :]` would move
    #  the replication onto the vld slot where supported.)
    cdf = jnp.zeros((n_bins, ft), jnp.float32)
    for i in range(n):
        xr = xmm_ref[i:i + 1, :]                              # (1, FT)
        cdf = cdf + jnp.where(xr <= thr, inv_n, 0.0)
    cdf_ref[...] = cdf                                        # aligned full-slab store

    # ---------------- histogram = [cdf[0, 0] broadcast, diff(cdf, axis=0)] -----
    # (faithfully mirrors the module's empirical_cdf_[0,0,0].expand(...))
    hist_ref[0:1, :] = jnp.full((1, ft), fb_ref[0, 0], dtype=jnp.float32)
    if n_bins > 1:
        # kept as value slices (one-off op outside the hot loop); a multi-tile
        # sublane rotate is deliberately avoided for portability.
        hist_ref[1:n_bins, :] = cdf[1:, :] - cdf[:-1, :]


def statistical_measures(x, x_minmax, *, mean_orders=(2, 3), n_bins=100):
    """x, x_minmax: (N, 1, F) float32. Returns (1, stat_dim, F) float32."""
    N, cin, F = x.shape
    assert cin == 1, "StatisticalMeasures expects shape (n_samples, 1, n_features)"
    assert x_minmax.shape == x.shape
    assert N >= 2

    n_stats = 1 + len(mean_orders) + 3
    n_scalar_rows = ((n_stats + 7) // 8) * 8                  # 8-sublane aligned block

    x2 = x[:, 0, :].astype(jnp.float32)                       # (N, F)
    xmm2 = x_minmax[:, 0, :].astype(jnp.float32)              # (N, F)

    # Histogram first-bin value = cdf[bin 0, feature 0] = mean(xmm[:, 0] <= 0.0).
    # Precomputed as one scalar so feature tiles stay independent (exact: threshold
    # 0 is exactly 0.0 and counts are exact in f32).
    fb = jnp.mean((xmm2[:, 0] <= 0.0).astype(jnp.float32)).reshape(1, 1)

    # Feature tiling: lane-dense tiles on a "parallel" grid axis (2nd TC on v7x and
    # DMA pipelining once F is large). F=128 -> single tile, single step.
    if F % 128 == 0:
        f_tile = 512 if F % 512 == 0 else (256 if F % 256 == 0 else 128)
    else:
        f_tile = F
    n_tiles = F // f_tile

    kern = functools.partial(
        _statistical_measures_kernel,
        n_samples=N, n_bins=n_bins, mean_orders=tuple(mean_orders),
        n_scalar_rows=n_scalar_rows)

    scal, cdf, hist = pl.pallas_call(
        kern,
        grid=(n_tiles,),
        in_specs=[
            pl.BlockSpec((N, f_tile), lambda j: (0, j)),
            pl.BlockSpec((N, f_tile), lambda j: (0, j)),
            pl.BlockSpec(memory_space=pltpu.MemorySpace.SMEM),
        ],
        out_specs=(
            pl.BlockSpec((n_scalar_rows, f_tile), lambda j: (0, j)),
            pl.BlockSpec((n_bins, f_tile), lambda j: (0, j)),
            pl.BlockSpec((n_bins, f_tile), lambda j: (0, j)),
        ),
        out_shape=(
            jax.ShapeDtypeStruct((n_scalar_rows, F), jnp.float32),
            jax.ShapeDtypeStruct((n_bins, F), jnp.float32),
            jax.ShapeDtypeStruct((n_bins, F), jnp.float32),
        ),
        compiler_params=pltpu.CompilerParams(
            dimension_semantics=("parallel",)),
    )(x2, xmm2, fb)

    out = jnp.concatenate([scal[:n_stats], cdf, hist], axis=0)  # (stat_dim, F)
    return out[None, :, :]                                      # (1, stat_dim, F)


def reference_forward(x, x_minmax, *, mean_orders=(2, 3), n_bins=100):
    """Pure-JAX reference matching the PyTorch module semantics (default flags)."""
    N, _, F = x.shape
    xs = x[:, 0, :].astype(jnp.float32)
    xmm = x_minmax[:, 0, :].astype(jnp.float32)

    mean = jnp.mean(xs, axis=0, keepdims=True)
    moms = [jnp.mean(xs ** o, axis=0, keepdims=True) for o in mean_orders]
    med = jnp.sort(xs, axis=0)[(N - 1) // 2][None, :]          # torch lower median
    std = jnp.std(xs, axis=0, ddof=1, keepdims=True)           # torch unbiased std
    mad = jnp.mean(jnp.abs(xs - mean), axis=0, keepdims=True)

    # torch.linspace(0, 1, n_bins): i * step with an exact 1.0 endpoint
    step = 1.0 / (n_bins - 1) if n_bins > 1 else 0.0
    thr = jnp.arange(n_bins, dtype=jnp.float32) * step
    if n_bins > 1:
        thr = thr.at[-1].set(1.0)
    cdf = jnp.mean((xmm[:, :, None] <= thr[None, None, :]).astype(jnp.float32),
                   axis=0).T                                    # (n_bins, F)
    hist = jnp.concatenate(
        [jnp.broadcast_to(cdf[0, 0], (1, F)), cdf[1:, :] - cdf[:-1, :]], axis=0)

    out = jnp.concatenate([mean] + moms + [med, std, mad, cdf, hist], axis=0)
    return out[None, :, :]


if __name__ == "__main__":
    # Small shapes consistent with the module: N samples, 1 channel, F features.
    N, F = 8, 128
    n_bins = 100
    mean_orders = (2, 3)

    key = jax.random.PRNGKey(0)
    x = jax.random.normal(key, (N, 1, F), jnp.float32)

    # min-max normalized companion input (per feature), as the module expects.
    # NOTE: constant features would divide by zero here (module-level concern).
    xmin = jnp.min(x, axis=0, keepdims=True)
    xmax = jnp.max(x, axis=0, keepdims=True)
    x_minmax = (x - xmin) / (xmax - xmin)

    out = statistical_measures(x, x_minmax, mean_orders=mean_orders, n_bins=n_bins)
    out = jax.block_until_ready(out)

    ref = reference_forward(x, x_minmax, mean_orders=mean_orders, n_bins=n_bins)

    stat_dim = 1 + len(mean_orders) + 3 + 2 * n_bins
    assert out.shape == (1, stat_dim, F), out.shape
    max_err = float(jnp.max(jnp.abs(out - ref)))
    assert max_err < 1e-4, f"max abs error too large: {max_err}"

    print("KERNEL_OK")
</pallas_src>

<mosaic_0001>
module attributes {stable_mosaic.version = 11 : i64} {
  func.func @_statistical_measures_kernel(%arg0: i32, %arg1: memref<8x128xf32, #tpu.memory_space<vmem>>, %arg2: memref<8x128xf32, #tpu.memory_space<vmem>>, %arg3: memref<1x1xf32, #tpu.memory_space<smem>>, %arg4: memref<8x128xf32, #tpu.memory_space<vmem>>, %arg5: memref<100x128xf32, #tpu.memory_space<vmem>>, %arg6: memref<100x128xf32, #tpu.memory_space<vmem>>) attributes {dimension_semantics = [#tpu.dimension_semantics<parallel>], iteration_bounds = array<i64: 1>, scalar_prefetch = 0 : i64, scratch_operands = 0 : i64, tpu.core_type = #tpu.core_type<tc>, window_params = [{transform_indices = @transform_0, window_bounds = array<i64: 8, 128>}, {transform_indices = @transform_1, window_bounds = array<i64: 8, 128>}, {transform_indices = @transform_2, window_bounds = array<i64: 1, 1>}, {transform_indices = @transform_3, window_bounds = array<i64: 8, 128>}, {transform_indices = @transform_4, window_bounds = array<i64: 100, 128>}, {transform_indices = @transform_5, window_bounds = array<i64: 100, 128>}]} {
    %c0 = arith.constant 0 : index
    %c0_0 = arith.constant 0 : index
    %0 = vector.load %arg1[%c0, %c0_0] : memref<8x128xf32, #tpu.memory_space<vmem>>, vector<8x128xf32>
    %cst = arith.constant dense<0.000000e+00> : vector<128xf32>
    %1 = vector.multi_reduction <add>, %0, %cst [0] : vector<8x128xf32> to vector<128xf32>
    %2 = vector.shape_cast %1 : vector<128xf32> to vector<1x128xf32>
    %cst_1 = arith.constant 1.250000e-01 : f32
    %3 = vector.broadcast %cst_1 : f32 to vector<1x128xf32>
    %4 = arith.mulf %2, %3 : vector<1x128xf32>
    %c0_2 = arith.constant 0 : index
    %c0_3 = arith.constant 0 : index
    %5 = vector.load %arg4[%c0_2, %c0_3] : memref<8x128xf32, #tpu.memory_space<vmem>>, vector<1x128xf32>
    tpu.vector_store %arg4[%c0_2, %c0_3], %4 {strides = array<i32>} : memref<8x128xf32, #tpu.memory_space<vmem>>, vector<1x128xf32>,
    %6 = arith.mulf %0, %0 : vector<8x128xf32>
    %7 = arith.mulf %6, %0 : vector<8x128xf32>
    %cst_4 = arith.constant dense<0.000000e+00> : vector<128xf32>
    %8 = vector.multi_reduction <add>, %6, %cst_4 [0] : vector<8x128xf32> to vector<128xf32>
    %9 = vector.shape_cast %8 : vector<128xf32> to vector<1x128xf32>
    %cst_5 = arith.constant 1.250000e-01 : f32
    %10 = vector.broadcast %cst_5 : f32 to vector<1x128xf32>
    %11 = arith.mulf %9, %10 : vector<1x128xf32>
    %c1 = arith.constant 1 : index
    %c0_6 = arith.constant 0 : index
    %12 = vector.load %arg4[%c1, %c0_6] : memref<8x128xf32, #tpu.memory_space<vmem>>, vector<1x128xf32>
    tpu.vector_store %arg4[%c1, %c0_6], %11 {strides = array<i32>} : memref<8x128xf32, #tpu.memory_space<vmem>>, vector<1x128xf32>,
    %cst_7 = arith.constant dense<0.000000e+00> : vector<128xf32>
    %13 = vector.multi_reduction <add>, %7, %cst_7 [0] : vector<8x128xf32> to vector<128xf32>
    %14 = vector.shape_cast %13 : vector<128xf32> to vector<1x128xf32>
    %cst_8 = arith.constant 1.250000e-01 : f32
    %15 = vector.broadcast %cst_8 : f32 to vector<1x128xf32>
    %16 = arith.mulf %14, %15 : vector<1x128xf32>
    %c2 = arith.constant 2 : index
    %c0_9 = arith.constant 0 : index
    %17 = vector.load %arg4[%c2, %c0_9] : memref<8x128xf32, #tpu.memory_space<vmem>>, vector<1x128xf32>
    tpu.vector_store %arg4[%c2, %c0_9], %16 {strides = array<i32>} : memref<8x128xf32, #tpu.memory_space<vmem>>, vector<1x128xf32>,
    %18 = vector.broadcast %4 : vector<1x128xf32> to vector<8x128xf32>
    %19 = arith.subf %0, %18 : vector<8x128xf32>
    %20 = arith.mulf %19, %19 : vector<8x128xf32>
    %cst_10 = arith.constant dense<0.000000e+00> : vector<128xf32>
    %21 = vector.multi_reduction <add>, %20, %cst_10 [0] : vector<8x128xf32> to vector<128xf32>
    %22 = vector.shape_cast %21 : vector<128xf32> to vector<1x128xf32>
    %cst_11 = arith.constant 0.142857149 : f32
    %23 = vector.broadcast %cst_11 : f32 to vector<1x128xf32>
    %24 = arith.mulf %22, %23 : vector<1x128xf32>
    %25 = math.sqrt %24 : vector<1x128xf32>
    %c4 = arith.constant 4 : index
    %c0_12 = arith.constant 0 : index
    %26 = vector.load %arg4[%c4, %c0_12] : memref<8x128xf32, #tpu.memory_space<vmem>>, vector<1x128xf32>
    tpu.vector_store %arg4[%c4, %c0_12], %25 {strides = array<i32>} : memref<8x128xf32, #tpu.memory_space<vmem>>, vector<1x128xf32>,
    %27 = math.absf %19 : vector<8x128xf32>
    %cst_13 = arith.constant dense<0.000000e+00> : vector<128xf32>
    %28 = vector.multi_reduction <add>, %27, %cst_13 [0] : vector<8x128xf32> to vector<128xf32>
    %29 = vector.shape_cast %28 : vector<128xf32> to vector<1x128xf32>
    %cst_14 = arith.constant 1.250000e-01 : f32
    %30 = vector.broadcast %cst_14 : f32 to vector<1x128xf32>
    %31 = arith.mulf %29, %30 : vector<1x128xf32>
    %c5 = arith.constant 5 : index
    %c0_15 = arith.constant 0 : index
    %32 = vector.load %arg4[%c5, %c0_15] : memref<8x128xf32, #tpu.memory_space<vmem>>, vector<1x128xf32>
    tpu.vector_store %arg4[%c5, %c0_15], %31 {strides = array<i32>} : memref<8x128xf32, #tpu.memory_space<vmem>>, vector<1x128xf32>,
    %cst_16 = arith.constant 0.000000e+00 : f32
    %33 = vector.broadcast %cst_16 : f32 to vector<2x128xf32>
    %c6 = arith.constant 6 : index
    %c0_17 = arith.constant 0 : index
    %34 = vector.load %arg4[%c6, %c0_17] : memref<8x128xf32, #tpu.memory_space<vmem>>, vector<2x128xf32>
    tpu.vector_store %arg4[%c6, %c0_17], %33 {strides = array<i32>} : memref<8x128xf32, #tpu.memory_space<vmem>>, vector<2x128xf32>,
    %35 = tpu.iota {dimensions = array<i32: 0>} : vector<8x128xi32>
    %c1_i32 = arith.constant 1 : i32
    %36 = vector.broadcast %c1_i32 : i32 to vector<8x128xi32>
    %37 = arith.andi %35, %36 : vector<8x128xi32>
    %c6_i32 = arith.constant 6 : i32
    %38 = vector.broadcast %c6_i32 : i32 to vector<8x128xi32>
    %39 = arith.cmpi sle, %35, %38 : vector<8x128xi32>
    %c0_i32 = arith.constant 0 : i32
    %40 = vector.broadcast %c0_i32 : i32 to vector<8x128xi32>
    %41 = arith.cmpi eq, %37, %40 : vector<8x128xi32>
    %42 = arith.andi %41, %39 : vector<8x128xi1>
    %c1_i32_18 = arith.constant 1 : i32
    %43 = vector.broadcast %c1_i32_18 : i32 to vector<8x128xi32>
    %44 = arith.cmpi eq, %37, %43 : vector<8x128xi32>
    %45 = arith.andi %44, %39 : vector<8x128xi1>
    %c1_i32_19 = arith.constant 1 : i32
    %46 = vector.broadcast %c1_i32_19 : i32 to vector<8x128xi32>
    %47 = arith.cmpi eq, %37, %46 : vector<8x128xi32>
    %c1_i32_20 = arith.constant 1 : i32
    %48 = vector.broadcast %c1_i32_20 : i32 to vector<8x128xi32>
    %49 = arith.cmpi sge, %35, %48 : vector<8x128xi32>
    %50 = arith.andi %47, %49 : vector<8x128xi1>
    %c0_i32_21 = arith.constant 0 : i32
    %51 = vector.broadcast %c0_i32_21 : i32 to vector<8x128xi32>
    %52 = arith.cmpi eq, %37, %51 : vector<8x128xi32>
    %c2_i32 = arith.constant 2 : i32
    %53 = vector.broadcast %c2_i32 : i32 to vector<8x128xi32>
    %54 = arith.cmpi sge, %35, %53 : vector<8x128xi32>
    %55 = arith.andi %52, %54 : vector<8x128xi1>
    %c7_i32 = arith.constant 7 : i32
    %56 = tpu.dynamic_rotate %0 by %c7_i32 dim 0 : vector<8x128xf32>, i32 -> vector<8x128xf32>
    %c1_i32_22 = arith.constant 1 : i32
    %57 = tpu.dynamic_rotate %0 by %c1_i32_22 dim 0 : vector<8x128xf32>, i32 -> vector<8x128xf32>
    %58 = arith.minimumf %0, %56 : vector<8x128xf32>
    %59 = arith.maximumf %0, %57 : vector<8x128xf32>
    %60 = arith.select %50, %59, %0 : vector<8x128xi1>, vector<8x128xf32>
    %61 = arith.select %42, %58, %60 : vector<8x128xi1>, vector<8x128xf32>
    %c7_i32_23 = arith.constant 7 : i32
    %62 = tpu.dynamic_rotate %61 by %c7_i32_23 dim 0 : vector<8x128xf32>, i32 -> vector<8x128xf32>
    %c1_i32_24 = arith.constant 1 : i32
    %63 = tpu.dynamic_rotate %61 by %c1_i32_24 dim 0 : vector<8x128xf32>, i32 -> vector<8x128xf32>
    %64 = arith.minimumf %61, %62 : vector<8x128xf32>
    %65 = arith.maximumf %61, %63 : vector<8x128xf32>
    %66 = arith.select %55, %65, %61 : vector<8x128xi1>, vector<8x128xf32>
    %67 = arith.select %45, %64, %66 : vector<8x128xi1>, vector<8x128xf32>
    %c7_i32_25 = arith.constant 7 : i32
    %68 = tpu.dynamic_rotate %67 by %c7_i32_25 dim 0 : vector<8x128xf32>, i32 -> vector<8x128xf32>
    %c1_i32_26 = arith.constant 1 : i32
    %69 = tpu.dynamic_rotate %67 by %c1_i32_26 dim 0 : vector<8x128xf32>, i32 -> vector<8x128xf32>
    %70 = arith.minimumf %67, %68 : vector<8x128xf32>
    %71 = arith.maximumf %67, %69 : vector<8x128xf32>
    %72 = arith.select %50, %71, %67 : vector<8x128xi1>, vector<8x128xf32>
    %73 = arith.select %42, %70, %72 : vector<8x128xi1>, vector<8x128xf32>
    %c7_i32_27 = arith.constant 7 : i32
    %74 = tpu.dynamic_rotate %73 by %c7_i32_27 dim 0 : vector<8x128xf32>, i32 -> vector<8x128xf32>
    %c1_i32_28 = arith.constant 1 : i32
    %75 = tpu.dynamic_rotate %73 by %c1_i32_28 dim 0 : vector<8x128xf32>, i32 -> vector<8x128xf32>
    %76 = arith.minimumf %73, %74 : vector<8x128xf32>
    %77 = arith.maximumf %73, %75 : vector<8x128xf32>
    %78 = arith.select %55, %77, %73 : vector<8x128xi1>, vector<8x128xf32>
    %79 = arith.select %45, %76, %78 : vector<8x128xi1>, vector<8x128xf32>
    %c7_i32_29 = arith.constant 7 : i32
    %80 = tpu.dynamic_rotate %79 by %c7_i32_29 dim 0 : vector<8x128xf32>, i32 -> vector<8x128xf32>
    %c1_i32_30 = arith.constant 1 : i32
    %81 = tpu.dynamic_rotate %79 by %c1_i32_30 dim 0 : vector<8x128xf32>, i32 -> vector<8x128xf32>
    %82 = arith.minimumf %79, %80 : vector<8x128xf32>
    %83 = arith.maximumf %79, %81 : vector<8x128xf32>
    %84 = arith.select %50, %83, %79 : vector<8x128xi1>, vector<8x128xf32>
    %85 = arith.select %42, %82, %84 : vector<8x128xi1>, vector<8x128xf32>
    %c7_i32_31 = arith.constant 7 : i32
    %86 = tpu.dynamic_rotate %85 by %c7_i32_31 dim 0 : vector<8x128xf32>, i32 -> vector<8x128xf32>
    %c1_i32_32 = arith.constant 1 : i32
    %87 = tpu.dynamic_rotate %85 by %c1_i32_32 dim 0 : vector<8x128xf32>, i32 -> vector<8x128xf32>
    %88 = arith.minimumf %85, %86 : vector<8x128xf32>
    %89 = arith.maximumf %85, %87 : vector<8x128xf32>
    %90 = arith.select %55, %89, %85 : vector<8x128xi1>, vector<8x128xf32>
    %91 = arith.select %45, %88, %90 : vector<8x128xi1>, vector<8x128xf32>
    %c7_i32_33 = arith.constant 7 : i32
    %92 = tpu.dynamic_rotate %91 by %c7_i32_33 dim 0 : vector<8x128xf32>, i32 -> vector<8x128xf32>
    %c1_i32_34 = arith.constant 1 : i32
    %93 = tpu.dynamic_rotate %91 by %c1_i32_34 dim 0 : vector<8x128xf32>, i32 -> vector<8x128xf32>
    %94 = arith.minimumf %91, %92 : vector<8x128xf32>
    %95 = arith.maximumf %91, %93 : vector<8x128xf32>
    %96 = arith.select %50, %95, %91 : vector<8x128xi1>, vector<8x128xf32>
    %97 = arith.select %42, %94, %96 : vector<8x128xi1>, vector<8x128xf32>
    %c7_i32_35 = arith.constant 7 : i32
    %98 = tpu.dynamic_rotate %97 by %c7_i32_35 dim 0 : vector<8x128xf32>, i32 -> vector<8x128xf32>
    %c1_i32_36 = arith.constant 1 : i32
    %99 = tpu.dynamic_rotate %97 by %c1_i32_36 dim 0 : vector<8x128xf32>, i32 -> vector<8x128xf32>
    %100 = arith.minimumf %97, %98 : vector<8x128xf32>
    %101 = arith.maximumf %97, %99 : vector<8x128xf32>
    %102 = arith.select %55, %101, %97 : vector<8x128xi1>, vector<8x128xf32>
    %103 = arith.select %45, %100, %102 : vector<8x128xi1>, vector<8x128xf32>
    %104 = vector.extract_strided_slice %103 {offsets = [3, 0], sizes = [1, 128], strides = [1, 1]} : vector<8x128xf32> to vector<1x128xf32>
    %c3 = arith.constant 3 : index
    %c0_37 = arith.constant 0 : index
    %105 = vector.load %arg4[%c3, %c0_37] : memref<8x128xf32, #tpu.memory_space<vmem>>, vector<1x128xf32>
    tpu.vector_store %arg4[%c3, %c0_37], %104 {strides = array<i32>} : memref<8x128xf32, #tpu.memory_space<vmem>>, vector<1x128xf32>,
    %106 = tpu.iota {dimensions = array<i32: 0>} : vector<100x128xi32>
    %107 = arith.sitofp %106 : vector<100x128xi32> to vector<100x128xf32>
    %cst_38 = arith.constant 0.0101010101 : f32
    %108 = vector.broadcast %cst_38 : f32 to vector<100x128xf32>
    %109 = arith.mulf %107, %108 : vector<100x128xf32>
    %c99_i32 = arith.constant 99 : i32
    %110 = vector.broadcast %c99_i32 : i32 to vector<100x128xi32>
    %111 = arith.cmpi eq, %106, %110 : vector<100x128xi32>
    %cst_39 = arith.constant 1.000000e+00 : f32
    %112 = vector.broadcast %cst_39 : f32 to vector<100x128xf32>
    %113 = arith.select %111, %112, %109 : vector<100x128xi1>, vector<100x128xf32>
    %cst_40 = arith.constant 0.000000e+00 : f32
    %114 = vector.broadcast %cst_40 : f32 to vector<100x128xf32>
    %c0_41 = arith.constant 0 : index
    %c0_42 = arith.constant 0 : index
    %115 = vector.load %arg2[%c0_41, %c0_42] : memref<8x128xf32, #tpu.memory_space<vmem>>, vector<1x128xf32>
    %116 = vector.broadcast %115 : vector<1x128xf32> to vector<100x128xf32>
    %117 = arith.cmpf ole, %116, %113 : vector<100x128xf32>
    %cst_43 = arith.constant 1.250000e-01 : f32
    %cst_44 = arith.constant 0.000000e+00 : f32
    %118 = vector.broadcast %cst_43 : f32 to vector<100x128xf32>
    %119 = vector.broadcast %cst_44 : f32 to vector<100x128xf32>
    %120 = arith.select %117, %118, %119 : vector<100x128xi1>, vector<100x128xf32>
    %121 = arith.addf %114, %120 : vector<100x128xf32>
    %c1_45 = arith.constant 1 : index
    %c0_46 = arith.constant 0 : index
    %122 = vector.load %arg2[%c1_45, %c0_46] : memref<8x128xf32, #tpu.memory_space<vmem>>, vector<1x128xf32>
    %123 = vector.broadcast %122 : vector<1x128xf32> to vector<100x128xf32>
    %124 = arith.cmpf ole, %123, %113 : vector<100x128xf32>
    %cst_47 = arith.constant 1.250000e-01 : f32
    %cst_48 = arith.constant 0.000000e+00 : f32
    %125 = vector.broadcast %cst_47 : f32 to vector<100x128xf32>
    %126 = vector.broadcast %cst_48 : f32 to vector<100x128xf32>
    %127 = arith.select %124, %125, %126 : vector<100x128xi1>, vector<100x128xf32>
    %128 = arith.addf %121, %127 : vector<100x128xf32>
    %c2_49 = arith.constant 2 : index
    %c0_50 = arith.constant 0 : index
    %129 = vector.load %arg2[%c2_49, %c0_50] : memref<8x128xf32, #tpu.memory_space<vmem>>, vector<1x128xf32>
    %130 = vector.broadcast %129 : vector<1x128xf32> to vector<100x128xf32>
    %131 = arith.cmpf ole, %130, %113 : vector<100x128xf32>
    %cst_51 = arith.constant 1.250000e-01 : f32
    %cst_52 = arith.constant 0.000000e+00 : f32
    %132 = vector.broadcast %cst_51 : f32 to vector<100x128xf32>
    %133 = vector.broadcast %cst_52 : f32 to vector<100x128xf32>
    %134 = arith.select %131, %132, %133 : vector<100x128xi1>, vector<100x128xf32>
    %135 = arith.addf %128, %134 : vector<100x128xf32>
    %c3_53 = arith.constant 3 : index
    %c0_54 = arith.constant 0 : index
    %136 = vector.load %arg2[%c3_53, %c0_54] : memref<8x128xf32, #tpu.memory_space<vmem>>, vector<1x128xf32>
    %137 = vector.broadcast %136 : vector<1x128xf32> to vector<100x128xf32>
    %138 = arith.cmpf ole, %137, %113 : vector<100x128xf32>
    %cst_55 = arith.constant 1.250000e-01 : f32
    %cst_56 = arith.constant 0.000000e+00 : f32
    %139 = vector.broadcast %cst_55 : f32 to vector<100x128xf32>
    %140 = vector.broadcast %cst_56 : f32 to vector<100x128xf32>
    %141 = arith.select %138, %139, %140 : vector<100x128xi1>, vector<100x128xf32>
    %142 = arith.addf %135, %141 : vector<100x128xf32>
    %c4_57 = arith.constant 4 : index
    %c0_58 = arith.constant 0 : index
    %143 = vector.load %arg2[%c4_57, %c0_58] : memref<8x128xf32, #tpu.memory_space<vmem>>, vector<1x128xf32>
    %144 = vector.broadcast %143 : vector<1x128xf32> to vector<100x128xf32>
    %145 = arith.cmpf ole, %144, %113 : vector<100x128xf32>
    %cst_59 = arith.constant 1.250000e-01 : f32
    %cst_60 = arith.constant 0.000000e+00 : f32
    %146 = vector.broadcast %cst_59 : f32 to vector<100x128xf32>
    %147 = vector.broadcast %cst_60 : f32 to vector<100x128xf32>
    %148 = arith.select %145, %146, %147 : vector<100x128xi1>, vector<100x128xf32>
    %149 = arith.addf %142, %148 : vector<100x128xf32>
    %c5_61 = arith.constant 5 : index
    %c0_62 = arith.constant 0 : index
    %150 = vector.load %arg2[%c5_61, %c0_62] : memref<8x128xf32, #tpu.memory_space<vmem>>, vector<1x128xf32>
    %151 = vector.broadcast %150 : vector<1x128xf32> to vector<100x128xf32>
    %152 = arith.cmpf ole, %151, %113 : vector<100x128xf32>
    %cst_63 = arith.constant 1.250000e-01 : f32
    %cst_64 = arith.constant 0.000000e+00 : f32
    %153 = vector.broadcast %cst_63 : f32 to vector<100x128xf32>
    %154 = vector.broadcast %cst_64 : f32 to vector<100x128xf32>
    %155 = arith.select %152, %153, %154 : vector<100x128xi1>, vector<100x128xf32>
    %156 = arith.addf %149, %155 : vector<100x128xf32>
    %c6_65 = arith.constant 6 : index
    %c0_66 = arith.constant 0 : index
    %157 = vector.load %arg2[%c6_65, %c0_66] : memref<8x128xf32, #tpu.memory_space<vmem>>, vector<1x128xf32>
    %158 = vector.broadcast %157 : vector<1x128xf32> to vector<100x128xf32>
    %159 = arith.cmpf ole, %158, %113 : vector<100x128xf32>
    %cst_67 = arith.constant 1.250000e-01 : f32
    %cst_68 = arith.constant 0.000000e+00 : f32
    %160 = vector.broadcast %cst_67 : f32 to vector<100x128xf32>
    %161 = vector.broadcast %cst_68 : f32 to vector<100x128xf32>
    %162 = arith.select %159, %160, %161 : vector<100x128xi1>, vector<100x128xf32>
    %163 = arith.addf %156, %162 : vector<100x128xf32>
    %c7 = arith.constant 7 : index
    %c0_69 = arith.constant 0 : index
    %164 = vector.load %arg2[%c7, %c0_69] : memref<8x128xf32, #tpu.memory_space<vmem>>, vector<1x128xf32>
    %165 = vector.broadcast %164 : vector<1x128xf32> to vector<100x128xf32>
    %166 = arith.cmpf ole, %165, %113 : vector<100x128xf32>
    %cst_70 = arith.constant 1.250000e-01 : f32
    %cst_71 = arith.constant 0.000000e+00 : f32
    %167 = vector.broadcast %cst_70 : f32 to vector<100x128xf32>
    %168 = vector.broadcast %cst_71 : f32 to vector<100x128xf32>
    %169 = arith.select %166, %167, %168 : vector<100x128xi1>, vector<100x128xf32>
    %170 = arith.addf %163, %169 : vector<100x128xf32>
    %c0_72 = arith.constant 0 : index
    %c0_73 = arith.constant 0 : index
    %171 = vector.load %arg5[%c0_72, %c0_73] : memref<100x128xf32, #tpu.memory_space<vmem>>, vector<100x128xf32>
    tpu.vector_store %arg5[%c0_72, %c0_73], %170 {strides = array<i32>} : memref<100x128xf32, #tpu.memory_space<vmem>>, vector<100x128xf32>,
    %c0_74 = arith.constant 0 : index
    %c0_75 = arith.constant 0 : index
    %172 = memref.load %arg3[%c0_74, %c0_75] : memref<1x1xf32, #tpu.memory_space<smem>>
    %173 = vector.broadcast %172 : f32 to vector<1x128xf32>
    %c0_76 = arith.constant 0 : index
    %c0_77 = arith.constant 0 : index
    %174 = vector.load %arg6[%c0_76, %c0_77] : memref<100x128xf32, #tpu.memory_space<vmem>>, vector<1x128xf32>
    tpu.vector_store %arg6[%c0_76, %c0_77], %173 {strides = array<i32>} : memref<100x128xf32, #tpu.memory_space<vmem>>, vector<1x128xf32>,
    %175 = vector.extract_strided_slice %170 {offsets = [1, 0], sizes = [99, 128], strides = [1, 1]} : vector<100x128xf32> to vector<99x128xf32>
    %176 = vector.extract_strided_slice %170 {offsets = [0, 0], sizes = [99, 128], strides = [1, 1]} : vector<100x128xf32> to vector<99x128xf32>
    %177 = arith.subf %175, %176 : vector<99x128xf32>
    %c1_78 = arith.constant 1 : index
    %c0_79 = arith.constant 0 : index
    %178 = vector.load %arg6[%c1_78, %c0_79] : memref<100x128xf32, #tpu.memory_space<vmem>>, vector<99x128xf32>
    tpu.vector_store %arg6[%c1_78, %c0_79], %177 {strides = array<i32>} : memref<100x128xf32, #tpu.memory_space<vmem>>, vector<99x128xf32>,
    return
  }
  func.func @transform_0(%arg0: i32) -> (i32, i32) {
    %c0_i32 = arith.constant 0 : i32
    %c0_i32_0 = arith.constant 0 : i32
    return %c0_i32, %arg0 : i32, i32
  }
  func.func @transform_1(%arg0: i32) -> (i32, i32) {
    %c0_i32 = arith.constant 0 : i32
    %c0_i32_0 = arith.constant 0 : i32
    return %c0_i32, %arg0 : i32, i32
  }
  func.func @transform_2(%arg0: i32) -> (i32, i32) {
    %c0_i32 = arith.constant 0 : i32
    %c0_i32_0 = arith.constant 0 : i32
    %c0_i32_1 = arith.constant 0 : i32
    return %c0_i32, %c0_i32_0 : i32, i32
  }
  func.func @transform_3(%arg0: i32) -> (i32, i32) {
    %c0_i32 = arith.constant 0 : i32
    %c0_i32_0 = arith.constant 0 : i32
    return %c0_i32, %arg0 : i32, i32
  }
  func.func @transform_4(%arg0: i32) -> (i32, i32) {
    %c0_i32 = arith.constant 0 : i32
    %c0_i32_0 = arith.constant 0 : i32
    return %c0_i32, %arg0 : i32, i32
  }
  func.func @transform_5(%arg0: i32) -> (i32, i32) {
    %c0_i32 = arith.constant 0 : i32
    %c0_i32_0 = arith.constant 0 : i32
    return %c0_i32, %arg0 : i32, i32
  }
}

</mosaic_0001>

<llo_original>
// kernel: tpu_custom_call.1
$region0: #{tpu_custom_call.1}
  #allocation0 [shape = 'u32[]', space=smem, size = 0x4, offset = 0x4, fixed_abs, tag = 'smem constant byte address 0x4 - core index']
  #allocation1 [shape = 'u32[144,128]{1,0:T(1,128)}', space=vmem, size = 0x12000, scoped, tag = 'internal scratch']
  #allocation2 [shape = 'f32[1,1]{1,0:T(1,128)S(6)}', space=smem, size = 0x200, scoped, tag = 'scoped memory for tpu_custom_call.1']
  %s0 = inlined_call_operand.hbm [shape: f32[8,128], index: 0, kind: input, shape index: {}]
  %s1 = inlined_call_operand.hbm [shape: f32[8,128], index: 1, kind: input, shape index: {}]
  %s2 = inlined_call_operand.<no memory space> [shape: f32[1,1], index: 2, kind: input, shape index: {}]
  %s3 = inlined_call_operand.hbm [shape: f32[8,128], index: 3, kind: output, shape index: {0}]
  %s4 = inlined_call_operand.hbm [shape: f32[100,128], index: 4, kind: output, shape index: {1}]
  %s5 = inlined_call_operand.hbm [shape: f32[100,128], index: 5, kind: output, shape index: {2}]
  %6 = xla_tuple %s3, %s4, %s5
  %s7 = sld [smem:[#allocation0]]
  $region46: #{tpu_custom_call.1} parent=0
    _
  %s9 = ssub.s32 1, %s7
  %s10 = scalar_select 0, %s9, %s7
  %11 = sst [smem:[#allocation2]] %s2
  $region1: #{tpu_custom_call.1} parent=0
    #allocation3 [shape = 'u8[4096]{0}', space=vmem, size = 0x1000, scoped, tag = 'input window, operand 0, single buffered']
    #allocation4 [shape = 's32[1]{0}', space=sflag, size = 0x4, scoped, tag = 'scoped memory for tpu_custom_call.1']
    #allocation5 [shape = 's32[1]{0}', space=sflag, size = 0x4, scoped, tag = 'scoped memory for tpu_custom_call.1']
    #allocation6 [shape = 'u8[4096]{0}', space=vmem, size = 0x1000, scoped, tag = 'input window, operand 1, single buffered']
    #allocation7 [shape = 's32[1]{0}', space=sflag, size = 0x4, scoped, tag = 'scoped memory for tpu_custom_call.1']
    #allocation8 [shape = 'u8[4096]{0}', space=vmem, size = 0x1000, scoped, tag = 'output window, operand 0, single buffered']
    #allocation9 [shape = 'u8[53248]{0}', space=vmem, size = 0xd000, scoped, tag = 'output window, operand 1, single buffered']
    #allocation10 [shape = 's32[1]{0}', space=sflag, size = 0x4, scoped, tag = 'scoped memory for tpu_custom_call.1']
    #allocation11 [shape = 'u8[53248]{0}', space=vmem, size = 0xd000, scoped, tag = 'output window, operand 2, single buffered']
    %12 = vsyncpa [#allocation4], 0
    %13 = vsyncpa [#allocation7], 0
    %14 = vsyncpa [#allocation5], 0
    %15 = vsyncpa [#allocation10], 0
    // Predicated region
    $region2: #{tpu_custom_call.1} parent=1 // pred_check
      _
    $region3: #{tpu_custom_call.1} parent=1 // pred_check_branch
      %17 = sbr.rel (0) target = $region5
    $region4: #{tpu_custom_call.1} parent=1 // pred_region
      %s19 = ssub.s32 128, 128
      %20 = vsyncadd [#allocation4], %s19
      %s22 = sshll.u32 [#allocation3], 4
      %s23 = int_to_ptr.vmem [resolvable:$true] %s22
      %25 = dma.hbm_to_vmem [thread:$0]  %s0, 128, %s23, [#allocation4]
    $region5: #{tpu_custom_call.1} parent=1 // pred_fallthru
      _
    // Predicated region
    $region6: #{tpu_custom_call.1} parent=1 // pred_check
      _
    $region7: #{tpu_custom_call.1} parent=1 // pred_check_branch
      %27 = sbr.rel (0) target = $region9
    $region8: #{tpu_custom_call.1} parent=1 // pred_region
      %s29 = ssub.s32 128, 128
      %30 = vsyncadd [#allocation7], %s29
      %s32 = sshll.u32 [#allocation6], 4
      %s33 = int_to_ptr.vmem [resolvable:$true] %s32
      %35 = dma.hbm_to_vmem [thread:$0]  %s1, 128, %s33, [#allocation7]
    $region9: #{tpu_custom_call.1} parent=1 // pred_fallthru
      _
    // Predicated region
    $region10: #{tpu_custom_call.1} parent=1 // pred_check
      _
    $region11: #{tpu_custom_call.1} parent=1 // pred_check_branch
      %37 = sbr.rel (0) target = $region13
    $region12: #{tpu_custom_call.1} parent=1 // pred_region
      _
    $region13: #{tpu_custom_call.1} parent=1 // pred_fallthru
      _
    // Predicated region
    $region14: #{tpu_custom_call.1} parent=1 // pred_check
      _
    $region15: #{tpu_custom_call.1} parent=1 // pred_check_branch
      %39 = sbr.rel (0) target = $region17
    $region16: #{tpu_custom_call.1} parent=1 // pred_region
      %40 = dma.done [#allocation4], 128
    $region17: #{tpu_custom_call.1} parent=1 // pred_fallthru
      _
    // Predicated region
    $region18: #{tpu_custom_call.1} parent=1 // pred_check
      _
    $region19: #{tpu_custom_call.1} parent=1 // pred_check_branch
      %42 = sbr.rel (0) target = $region21
    $region20: #{tpu_custom_call.1} parent=1 // pred_region
      %43 = dma.done [#allocation7], 128
    $region21: #{tpu_custom_call.1} parent=1 // pred_fallthru
      _
    %v44 = vld [vmem:[#allocation3] sm:$0xff]
    %v45 = vrot.slane %v44, 4
    %v46 = vadd.f32 %v44, %v45
    %v47 = vrot.slane %v46, 2
    %v48 = vadd.f32 %v46, %v47
    %v49 = vrot.slane %v48, 1
    %v50 = vadd.f32 %v48, %v49
    %v51 = vmul.f32 %v50, 0.125
    %52 = vst [vmem:[#allocation8] sm:$0x1] %v51
    %v53 = vmul.f32 %v44, %v44
    %v54 = vmul.f32 %v53, %v44
    %v55 = vrot.slane %v53, 4
    %v56 = vadd.f32 %v53, %v55
    %v57 = vrot.slane %v56, 2
    %v58 = vadd.f32 %v56, %v57
    %v59 = vrot.slane %v58, 1
    %v60 = vadd.f32 %v58, %v59
    %v61 = vmul.f32 %v60, 0.125
    %62 = vst [vmem:[#allocation8 + $0x1] sm:$0x1] %v61
    %v63 = vrot.slane %v54, 4
    %v64 = vadd.f32 %v54, %v63
    %v65 = vrot.slane %v64, 2
    %v66 = vadd.f32 %v64, %v65
    %v67 = vrot.slane %v66, 1
    %v68 = vadd.f32 %v66, %v67
    %v69 = vmul.f32 %v68, 0.125
    %70 = vst [vmem:[#allocation8 + $0x2] sm:$0x1] %v69
    %v71 = vsub.f32 %v44, %v51
    %v72 = vmul.f32 %v71, %v71
    %v73 = vrot.slane %v72, 4
    %v74 = vadd.f32 %v72, %v73
    %v75 = vrot.slane %v74, 2
    %v76 = vadd.f32 %v74, %v75
    %v77 = vrot.slane %v76, 1
    %v78 = vadd.f32 %v76, %v77
    %v79 = vmul.f32 %v78, 0.14285715
    %v80 = vrsqrt.pop %v79
    %v81 = vmul.f32 %v79, %v80
    %vm82 = vcmp.eq.f32.partialorder %v79, inf
    %v83 = vsel %vm82, %v79, %v81
    %vm84 = vcmp.eq.f32.partialorder %v79, 0.0
    %v85 = vand.u32 %v79, 2147483648
    %v86 = vsel %vm84, %v85, %v83
    %87 = vst [vmem:[#allocation8 + $0x4] sm:$0x1] %v86
    %v88 = vand.u32 2147483647, %v71
    %v89 = vrot.slane %v88, 4
    %v90 = vadd.f32 %v88, %v89
    %v91 = vrot.slane %v90, 2
    %v92 = vadd.f32 %v90, %v91
    %v93 = vrot.slane %v92, 1
    %v94 = vadd.f32 %v92, %v93
    %v95 = vmul.f32 %v94, 0.125
    %96 = vst [vmem:[#allocation8 + $0x5] sm:$0x1] %v95
    %97 = vst [vmem:[#allocation8 + $0x6] sm:$0x3] 0.0
    %v98 = vlaneseq
    %v99 = vshrl.u32 %v98, 7
    %v100 = vand.u32 %v99, 1
    %vm101 = vcmp.le.s32.totalorder %v99, 6
    %vm102 = vcmp.eq.s32.totalorder %v100, 0
    %vm103 = vmand %vm102, %vm101
    %vm104 = vcmp.eq.s32.totalorder %v100, 1
    %vm105 = vmand %vm104, %vm101
    %vm106 = vcmp.ge.s32.totalorder %v99, 1
    %vm107 = vmand %vm104, %vm106
    %vm108 = vcmp.ge.s32.totalorder %v99, 2
    %vm109 = vmand %vm102, %vm108
    %v110 = vrot.slane %v44, 1
    %v111 = vrot.slane %v44, 7
    %v112 = vmin.f32 %v44, %v110
    %v113 = vmax.f32 %v44, %v111
    %v114 = vsel %vm107, %v113, %v44
    %v115 = vsel %vm103, %v112, %v114
    %v116 = vrot.slane %v115, 1
    %v117 = vrot.slane %v115, 7
    %v118 = vmin.f32 %v115, %v116
    %v119 = vmax.f32 %v115, %v117
    %v120 = vsel %vm109, %v119, %v115
    %v121 = vsel %vm105, %v118, %v120
    %v122 = vrot.slane %v121, 1
    %v123 = vrot.slane %v121, 7
    %v124 = vmin.f32 %v121, %v122
    %v125 = vmax.f32 %v121, %v123
    %v126 = vsel %vm107, %v125, %v121
    %v127 = vsel %vm103, %v124, %v126
    %v128 = vrot.slane %v127, 1
    %v129 = vrot.slane %v127, 7
    %v130 = vmin.f32 %v127, %v128
    %v131 = vmax.f32 %v127, %v129
    %v132 = vsel %vm109, %v131, %v127
    %v133 = vsel %vm105, %v130, %v132
    %v134 = vrot.slane %v133, 1
    %v135 = vrot.slane %v133, 7
    %v136 = vmin.f32 %v133, %v134
    %v137 = vmax.f32 %v133, %v135
    %v138 = vsel %vm107, %v137, %v133
    %v139 = vsel %vm103, %v136, %v138
    %v140 = vrot.slane %v139, 1
    %v141 = vrot.slane %v139, 7
    %v142 = vmin.f32 %v139, %v140
    %v143 = vmax.f32 %v139, %v141
    %v144 = vsel %vm109, %v143, %v139
    %v145 = vsel %vm105, %v142, %v144
    %v146 = vrot.slane %v145, 1
    %v147 = vrot.slane %v145, 7
    %v148 = vmin.f32 %v145, %v146
    %v149 = vmax.f32 %v145, %v147
    %v150 = vsel %vm107, %v149, %v145
    %v151 = vsel %vm103, %v148, %v150
    %v152 = vrot.slane %v151, 1
    %v153 = vrot.slane %v151, 7
    %v154 = vmin.f32 %v151, %v152
    %v155 = vmax.f32 %v151, %v153
    %v156 = vsel %vm109, %v155, %v151
    %v157 = vsel %vm105, %v154, %v156
    %158 = vst [vmem:[#allocation8] sm:$0x8] %v157
    %v159 = vadd.s32 %v99, 8
    %v160 = vadd.s32 %v99, 16
    %v161 = vadd.s32 %v99, 24
    %v162 = vadd.s32 %v99, 32
    %v163 = vadd.s32 %v99, 40
    %v164 = vadd.s32 %v99, 48
    %v165 = vadd.s32 %v99, 56
    %v166 = vadd.s32 %v99, 64
    %v167 = vadd.s32 %v99, 72
    %v168 = vadd.s32 %v99, 80
    %v169 = vadd.s32 %v99, 88
    %v170 = vadd.s32 %v99, 96
    %v171 = vcvt.s32.f32 %v99
    %v172 = vcvt.s32.f32 %v159
    %v173 = vcvt.s32.f32 %v160
    %v174 = vcvt.s32.f32 %v161
    %v175 = vcvt.s32.f32 %v162
    %v176 = vcvt.s32.f32 %v163
    %v177 = vcvt.s32.f32 %v164
    %v178 = vcvt.s32.f32 %v165
    %v179 = vcvt.s32.f32 %v166
    %v180 = vcvt.s32.f32 %v167
    %v181 = vcvt.s32.f32 %v168
    %v182 = vcvt.s32.f32 %v169
    %v183 = vcvt.s32.f32 %v170
    %v184 = vmul.f32 %v171, 0.01010101
    %v185 = vmul.f32 %v172, 0.01010101
    %v186 = vmul.f32 %v173, 0.01010101
    %v187 = vmul.f32 %v174, 0.01010101
    %v188 = vmul.f32 %v175, 0.01010101
    %v189 = vmul.f32 %v176, 0.01010101
    %v190 = vmul.f32 %v177, 0.01010101
    %v191 = vmul.f32 %v178, 0.01010101
    %v192 = vmul.f32 %v179, 0.01010101
    %v193 = vmul.f32 %v180, 0.01010101
    %v194 = vmul.f32 %v181, 0.01010101
    %v195 = vmul.f32 %v182, 0.01010101
    %v196 = vmul.f32 %v183, 0.01010101
    %vm197 = vcmp.eq.s32.totalorder %v99, 99
    %vm198 = vcmp.eq.s32.totalorder %v159, 99
    %vm199 = vcmp.eq.s32.totalorder %v160, 99
    %vm200 = vcmp.eq.s32.totalorder %v161, 99
    %vm201 = vcmp.eq.s32.totalorder %v162, 99
    %vm202 = vcmp.eq.s32.totalorder %v163, 99
    %vm203 = vcmp.eq.s32.totalorder %v164, 99
    %vm204 = vcmp.eq.s32.totalorder %v165, 99
    %vm205 = vcmp.eq.s32.totalorder %v166, 99
    %vm206 = vcmp.eq.s32.totalorder %v167, 99
    %vm207 = vcmp.eq.s32.totalorder %v168, 99
    %vm208 = vcmp.eq.s32.totalorder %v169, 99
    %vm209 = vcmp.eq.s32.totalorder %v170, 99
    %v210 = vsel %vm197, 1.0, %v184
    %v211 = vsel %vm198, 1.0, %v185
    %v212 = vsel %vm199, 1.0, %v186
    %v213 = vsel %vm200, 1.0, %v187
    %v214 = vsel %vm201, 1.0, %v188
    %v215 = vsel %vm202, 1.0, %v189
    %v216 = vsel %vm203, 1.0, %v190
    %v217 = vsel %vm204, 1.0, %v191
    %v218 = vsel %vm205, 1.0, %v192
    %v219 = vsel %vm206, 1.0, %v193
    %v220 = vsel %vm207, 1.0, %v194
    %v221 = vsel %vm208, 1.0, %v195
    %v222 = vsel %vm209, 1.0, %v196
    %v223 = vld [vmem:[#allocation6] sm:$0x1]
    %v224 = vlaneseq
    %v225 = vshrl.u32 %v224, 7
    %v226 = vsub.s32 0, %v225
    %v227 = vrot.slane %v223, %v226
    %vm228 = vcmp.le.f32.partialorder %v227, %v210
    %vm229 = vcmp.le.f32.partialorder %v227, %v211
    %vm230 = vcmp.le.f32.partialorder %v227, %v212
    %vm231 = vcmp.le.f32.partialorder %v227, %v213
    %vm232 = vcmp.le.f32.partialorder %v227, %v214
    %vm233 = vcmp.le.f32.partialorder %v227, %v215
    %vm234 = vcmp.le.f32.partialorder %v227, %v216
    %vm235 = vcmp.le.f32.partialorder %v227, %v217
    %vm236 = vcmp.le.f32.partialorder %v227, %v218
    %vm237 = vcmp.le.f32.partialorder %v227, %v219
    %vm238 = vcmp.le.f32.partialorder %v227, %v220
    %vm239 = vcmp.le.f32.partialorder %v227, %v221
    %vm240 = vcmp.le.f32.partialorder %v227, %v222
    %v241 = vsel %vm228, 0.125, 0.0
    %v242 = vsel %vm229, 0.125, 0.0
    %v243 = vsel %vm230, 0.125, 0.0
    %v244 = vsel %vm231, 0.125, 0.0
    %v245 = vsel %vm232, 0.125, 0.0
    %v246 = vsel %vm233, 0.125, 0.0
    %v247 = vsel %vm234, 0.125, 0.0
    %v248 = vsel %vm235, 0.125, 0.0
    %v249 = vsel %vm236, 0.125, 0.0
    %v250 = vsel %vm237, 0.125, 0.0
    %v251 = vsel %vm238, 0.125, 0.0
    %v252 = vsel %vm239, 0.125, 0.0
    %v253 = vsel %vm240, 0.125, 0.0
    %v254 = vadd.f32 %v241, 0.0
    %v255 = vadd.f32 %v242, 0.0
    %v256 = vadd.f32 %v243, 0.0
    %v257 = vadd.f32 %v244, 0.0
    %v258 = vadd.f32 %v245, 0.0
    %v259 = vadd.f32 %v246, 0.0
    %v260 = vadd.f32 %v247, 0.0
    %v261 = vadd.f32 %v248, 0.0
    %v262 = vadd.f32 %v249, 0.0
    %v263 = vadd.f32 %v250, 0.0
    %v264 = vadd.f32 %v251, 0.0
    %v265 = vadd.f32 %v252, 0.0
    %v266 = vadd.f32 %v253, 0.0
    %v267 = vld [vmem:[#allocation6 + $0x1] sm:$0x1]
    %v268 = vlaneseq
    %v269 = vshrl.u32 %v268, 7
    %v270 = vsub.s32 0, %v269
    %v271 = vrot.slane %v267, %v270
    %vm272 = vcmp.le.f32.partialorder %v271, %v210
    %vm273 = vcmp.le.f32.partialorder %v271, %v211
    %vm274 = vcmp.le.f32.partialorder %v271, %v212
    %vm275 = vcmp.le.f32.partialorder %v271, %v213
    %vm276 = vcmp.le.f32.partialorder %v271, %v214
    %vm277 = vcmp.le.f32.partialorder %v271, %v215
    %vm278 = vcmp.le.f32.partialorder %v271, %v216
    %vm279 = vcmp.le.f32.partialorder %v271, %v217
    %vm280 = vcmp.le.f32.partialorder %v271, %v218
    %vm281 = vcmp.le.f32.partialorder %v271, %v219
    %vm282 = vcmp.le.f32.partialorder %v271, %v220
    %vm283 = vcmp.le.f32.partialorder %v271, %v221
    %vm284 = vcmp.le.f32.partialorder %v271, %v222
    %v285 = vsel %vm272, 0.125, 0.0
    %v286 = vsel %vm273, 0.125, 0.0
    %v287 = vsel %vm274, 0.125, 0.0
    %v288 = vsel %vm275, 0.125, 0.0
    %v289 = vsel %vm276, 0.125, 0.0
    %v290 = vsel %vm277, 0.125, 0.0
    %v291 = vsel %vm278, 0.125, 0.0
    %v292 = vsel %vm279, 0.125, 0.0
    %v293 = vsel %vm280, 0.125, 0.0
    %v294 = vsel %vm281, 0.125, 0.0
    %v295 = vsel %vm282, 0.125, 0.0
    %v296 = vsel %vm283, 0.125, 0.0
    %v297 = vsel %vm284, 0.125, 0.0
    %v298 = vadd.f32 %v254, %v285
    %v299 = vadd.f32 %v255, %v286
    %v300 = vadd.f32 %v256, %v287
    %v301 = vadd.f32 %v257, %v288
    %v302 = vadd.f32 %v258, %v289
    %v303 = vadd.f32 %v259, %v290
    %v304 = vadd.f32 %v260, %v291
    %v305 = vadd.f32 %v261, %v292
    %v306 = vadd.f32 %v262, %v293
    %v307 = vadd.f32 %v263, %v294
    %v308 = vadd.f32 %v264, %v295
    %v309 = vadd.f32 %v265, %v296
    %v310 = vadd.f32 %v266, %v297
    %v311 = vld [vmem:[#allocation6 + $0x2] sm:$0x1]
    %v312 = vlaneseq
    %v313 = vshrl.u32 %v312, 7
    %v314 = vsub.s32 0, %v313
    %v315 = vrot.slane %v311, %v314
    %vm316 = vcmp.le.f32.partialorder %v315, %v210
    %vm317 = vcmp.le.f32.partialorder %v315, %v211
    %vm318 = vcmp.le.f32.partialorder %v315, %v212
    %vm319 = vcmp.le.f32.partialorder %v315, %v213
    %vm320 = vcmp.le.f32.partialorder %v315, %v214
    %vm321 = vcmp.le.f32.partialorder %v315, %v215
    %vm322 = vcmp.le.f32.partialorder %v315, %v216
    %vm323 = vcmp.le.f32.partialorder %v315, %v217
    %vm324 = vcmp.le.f32.partialorder %v315, %v218
    %vm325 = vcmp.le.f32.partialorder %v315, %v219
    %vm326 = vcmp.le.f32.partialorder %v315, %v220
    %vm327 = vcmp.le.f32.partialorder %v315, %v221
    %vm328 = vcmp.le.f32.partialorder %v315, %v222
    %v329 = vsel %vm316, 0.125, 0.0
    %v330 = vsel %vm317, 0.125, 0.0
    %v331 = vsel %vm318, 0.125, 0.0
    %v332 = vsel %vm319, 0.125, 0.0
    %v333 = vsel %vm320, 0.125, 0.0
    %v334 = vsel %vm321, 0.125, 0.0
    %v335 = vsel %vm322, 0.125, 0.0
    %v336 = vsel %vm323, 0.125, 0.0
    %v337 = vsel %vm324, 0.125, 0.0
    %v338 = vsel %vm325, 0.125, 0.0
    %v339 = vsel %vm326, 0.125, 0.0
    %v340 = vsel %vm327, 0.125, 0.0
    %v341 = vsel %vm328, 0.125, 0.0
    %v342 = vadd.f32 %v298, %v329
    %v343 = vadd.f32 %v299, %v330
    %v344 = vadd.f32 %v300, %v331
    %v345 = vadd.f32 %v301, %v332
    %v346 = vadd.f32 %v302, %v333
    %v347 = vadd.f32 %v303, %v334
    %v348 = vadd.f32 %v304, %v335
    %v349 = vadd.f32 %v305, %v336
    %v350 = vadd.f32 %v306, %v337
    %v351 = vadd.f32 %v307, %v338
    %v352 = vadd.f32 %v308, %v339
    %v353 = vadd.f32 %v309, %v340
    %v354 = vadd.f32 %v310, %v341
    %v355 = vld [vmem:[#allocation6 + $0x3] sm:$0x1]
    %v356 = vlaneseq
    %v357 = vshrl.u32 %v356, 7
    %v358 = vsub.s32 0, %v357
    %v359 = vrot.slane %v355, %v358
    %vm360 = vcmp.le.f32.partialorder %v359, %v210
    %vm361 = vcmp.le.f32.partialorder %v359, %v211
    %vm362 = vcmp.le.f32.partialorder %v359, %v212
    %vm363 = vcmp.le.f32.partialorder %v359, %v213
    %vm364 = vcmp.le.f32.partialorder %v359, %v214
    %vm365 = vcmp.le.f32.partialorder %v359, %v215
    %vm366 = vcmp.le.f32.partialorder %v359, %v216
    %vm367 = vcmp.le.f32.partialorder %v359, %v217
    %vm368 = vcmp.le.f32.partialorder %v359, %v218
    %vm369 = vcmp.le.f32.partialorder %v359, %v219
    %vm370 = vcmp.le.f32.partialorder %v359, %v220
    %vm371 = vcmp.le.f32.partialorder %v359, %v221
    %vm372 = vcmp.le.f32.partialorder %v359, %v222
    %v373 = vsel %vm360, 0.125, 0.0
    %v374 = vsel %vm361, 0.125, 0.0
    %v375 = vsel %vm362, 0.125, 0.0
    %v376 = vsel %vm363, 0.125, 0.0
    %v377 = vsel %vm364, 0.125, 0.0
    %v378 = vsel %vm365, 0.125, 0.0
    %v379 = vsel %vm366, 0.125, 0.0
    %v380 = vsel %vm367, 0.125, 0.0
    %v381 = vsel %vm368, 0.125, 0.0
    %v382 = vsel %vm369, 0.125, 0.0
    %v383 = vsel %vm370, 0.125, 0.0
    %v384 = vsel %vm371, 0.125, 0.0
    %v385 = vsel %vm372, 0.125, 0.0
    %v386 = vadd.f32 %v342, %v373
    %v387 = vadd.f32 %v343, %v374
    %v388 = vadd.f32 %v344, %v375
    %v389 = vadd.f32 %v345, %v376
    %v390 = vadd.f32 %v346, %v377
    %v391 = vadd.f32 %v347, %v378
    %v392 = vadd.f32 %v348, %v379
    %v393 = vadd.f32 %v349, %v380
    %v394 = vadd.f32 %v350, %v381
    %v395 = vadd.f32 %v351, %v382
    %v396 = vadd.f32 %v352, %v383
    %v397 = vadd.f32 %v353, %v384
    %v398 = vadd.f32 %v354, %v385
    %v399 = vld [vmem:[#allocation6 + $0x4] sm:$0x1]
    %v400 = vlaneseq
    %v401 = vshrl.u32 %v400, 7
    %v402 = vsub.s32 0, %v401
    %v403 = vrot.slane %v399, %v402
    %vm404 = vcmp.le.f32.partialorder %v403, %v210
    %vm405 = vcmp.le.f32.partialorder %v403, %v211
    %vm406 = vcmp.le.f32.partialorder %v403, %v212
    %vm407 = vcmp.le.f32.partialorder %v403, %v213
    %vm408 = vcmp.le.f32.partialorder %v403, %v214
    %vm409 = vcmp.le.f32.partialorder %v403, %v215
    %vm410 = vcmp.le.f32.partialorder %v403, %v216
    %vm411 = vcmp.le.f32.partialorder %v403, %v217
    %vm412 = vcmp.le.f32.partialorder %v403, %v218
    %vm413 = vcmp.le.f32.partialorder %v403, %v219
    %vm414 = vcmp.le.f32.partialorder %v403, %v220
    %vm415 = vcmp.le.f32.partialorder %v403, %v221
    %vm416 = vcmp.le.f32.partialorder %v403, %v222
    %v417 = vsel %vm404, 0.125, 0.0
    %v418 = vsel %vm405, 0.125, 0.0
    %v419 = vsel %vm406, 0.125, 0.0
    %v420 = vsel %vm407, 0.125, 0.0
    %v421 = vsel %vm408, 0.125, 0.0
    %v422 = vsel %vm409, 0.125, 0.0
    %v423 = vsel %vm410, 0.125, 0.0
    %v424 = vsel %vm411, 0.125, 0.0
    %v425 = vsel %vm412, 0.125, 0.0
    %v426 = vsel %vm413, 0.125, 0.0
    %v427 = vsel %vm414, 0.125, 0.0
    %v428 = vsel %vm415, 0.125, 0.0
    %v429 = vsel %vm416, 0.125, 0.0
    %v430 = vadd.f32 %v386, %v417
    %v431 = vadd.f32 %v387, %v418
    %v432 = vadd.f32 %v388, %v419
    %v433 = vadd.f32 %v389, %v420
    %v434 = vadd.f32 %v390, %v421
    %v435 = vadd.f32 %v391, %v422
    %v436 = vadd.f32 %v392, %v423
    %v437 = vadd.f32 %v393, %v424
    %v438 = vadd.f32 %v394, %v425
    %v439 = vadd.f32 %v395, %v426
    %v440 = vadd.f32 %v396, %v427
    %v441 = vadd.f32 %v397, %v428
    %v442 = vadd.f32 %v398, %v429
    %v443 = vld [vmem:[#allocation6 + $0x5] sm:$0x1]
    %v444 = vlaneseq
    %v445 = vshrl.u32 %v444, 7
    %v446 = vsub.s32 0, %v445
    %v447 = vrot.slane %v443, %v446
    %vm448 = vcmp.le.f32.partialorder %v447, %v210
    %vm449 = vcmp.le.f32.partialorder %v447, %v211
    %vm450 = vcmp.le.f32.partialorder %v447, %v212
    %vm451 = vcmp.le.f32.partialorder %v447, %v213
    %vm452 = vcmp.le.f32.partialorder %v447, %v214
    %vm453 = vcmp.le.f32.partialorder %v447, %v215
    %vm454 = vcmp.le.f32.partialorder %v447, %v216
    %vm455 = vcmp.le.f32.partialorder %v447, %v217
    %vm456 = vcmp.le.f32.partialorder %v447, %v218
    %vm457 = vcmp.le.f32.partialorder %v447, %v219
    %vm458 = vcmp.le.f32.partialorder %v447, %v220
    %vm459 = vcmp.le.f32.partialorder %v447, %v221
    %vm460 = vcmp.le.f32.partialorder %v447, %v222
    %v461 = vsel %vm448, 0.125, 0.0
    %v462 = vsel %vm449, 0.125, 0.0
    %v463 = vsel %vm450, 0.125, 0.0
    %v464 = vsel %vm451, 0.125, 0.0
    %v465 = vsel %vm452, 0.125, 0.0
    %v466 = vsel %vm453, 0.125, 0.0
    %v467 = vsel %vm454, 0.125, 0.0
    %v468 = vsel %vm455, 0.125, 0.0
    %v469 = vsel %vm456, 0.125, 0.0
    %v470 = vsel %vm457, 0.125, 0.0
    %v471 = vsel %vm458, 0.125, 0.0
    %v472 = vsel %vm459, 0.125, 0.0
    %v473 = vsel %vm460, 0.125, 0.0
    %v474 = vadd.f32 %v430, %v461
    %v475 = vadd.f32 %v431, %v462
    %v476 = vadd.f32 %v432, %v463
    %v477 = vadd.f32 %v433, %v464
    %v478 = vadd.f32 %v434, %v465
    %v479 = vadd.f32 %v435, %v466
    %v480 = vadd.f32 %v436, %v467
    %v481 = vadd.f32 %v437, %v468
    %v482 = vadd.f32 %v438, %v469
    %v483 = vadd.f32 %v439, %v470
    %v484 = vadd.f32 %v440, %v471
    %v485 = vadd.f32 %v441, %v472
    %v486 = vadd.f32 %v442, %v473
    %v487 = vld [vmem:[#allocation6 + $0x6] sm:$0x1]
    %v488 = vlaneseq
    %v489 = vshrl.u32 %v488, 7
    %v490 = vsub.s32 0, %v489
    %v491 = vrot.slane %v487, %v490
    %vm492 = vcmp.le.f32.partialorder %v491, %v210
    %vm493 = vcmp.le.f32.partialorder %v491, %v211
    %vm494 = vcmp.le.f32.partialorder %v491, %v212
    %vm495 = vcmp.le.f32.partialorder %v491, %v213
    %vm496 = vcmp.le.f32.partialorder %v491, %v214
    %vm497 = vcmp.le.f32.partialorder %v491, %v215
    %vm498 = vcmp.le.f32.partialorder %v491, %v216
    %vm499 = vcmp.le.f32.partialorder %v491, %v217
    %vm500 = vcmp.le.f32.partialorder %v491, %v218
    %vm501 = vcmp.le.f32.partialorder %v491, %v219
    %vm502 = vcmp.le.f32.partialorder %v491, %v220
    %vm503 = vcmp.le.f32.partialorder %v491, %v221
    %vm504 = vcmp.le.f32.partialorder %v491, %v222
    %v505 = vsel %vm492, 0.125, 0.0
    %v506 = vsel %vm493, 0.125, 0.0
    %v507 = vsel %vm494, 0.125, 0.0
    %v508 = vsel %vm495, 0.125, 0.0
    %v509 = vsel %vm496, 0.125, 0.0
    %v510 = vsel %vm497, 0.125, 0.0
    %v511 = vsel %vm498, 0.125, 0.0
    %v512 = vsel %vm499, 0.125, 0.0
    %v513 = vsel %vm500, 0.125, 0.0
    %v514 = vsel %vm501, 0.125, 0.0
    %v515 = vsel %vm502, 0.125, 0.0
    %v516 = vsel %vm503, 0.125, 0.0
    %v517 = vsel %vm504, 0.125, 0.0
    %v518 = vadd.f32 %v474, %v505
    %v519 = vadd.f32 %v475, %v506
    %v520 = vadd.f32 %v476, %v507
    %v521 = vadd.f32 %v477, %v508
    %v522 = vadd.f32 %v478, %v509
    %v523 = vadd.f32 %v479, %v510
    %v524 = vadd.f32 %v480, %v511
    %v525 = vadd.f32 %v481, %v512
    %v526 = vadd.f32 %v482, %v513
    %v527 = vadd.f32 %v483, %v514
    %v528 = vadd.f32 %v484, %v515
    %v529 = vadd.f32 %v485, %v516
    %v530 = vadd.f32 %v486, %v517
    %v531 = vld [vmem:[#allocation6 + $0x7] sm:$0x1]
    %v532 = vlaneseq
    %v533 = vshrl.u32 %v532, 7
    %v534 = vsub.s32 0, %v533
    %v535 = vrot.slane %v531, %v534
    %vm536 = vcmp.le.f32.partialorder %v535, %v210
    %vm537 = vcmp.le.f32.partialorder %v535, %v211
    %vm538 = vcmp.le.f32.partialorder %v535, %v212
    %vm539 = vcmp.le.f32.partialorder %v535, %v213
    %vm540 = vcmp.le.f32.partialorder %v535, %v214
    %vm541 = vcmp.le.f32.partialorder %v535, %v215
    %vm542 = vcmp.le.f32.partialorder %v535, %v216
    %vm543 = vcmp.le.f32.partialorder %v535, %v217
    %vm544 = vcmp.le.f32.partialorder %v535, %v218
    %vm545 = vcmp.le.f32.partialorder %v535, %v219
    %vm546 = vcmp.le.f32.partialorder %v535, %v220
    %vm547 = vcmp.le.f32.partialorder %v535, %v221
    %vm548 = vcmp.le.f32.partialorder %v535, %v222
    %v549 = vsel %vm536, 0.125, 0.0
    %v550 = vsel %vm537, 0.125, 0.0
    %v551 = vsel %vm538, 0.125, 0.0
    %v552 = vsel %vm539, 0.125, 0.0
    %v553 = vsel %vm540, 0.125, 0.0
    %v554 = vsel %vm541, 0.125, 0.0
    %v555 = vsel %vm542, 0.125, 0.0
    %v556 = vsel %vm543, 0.125, 0.0
    %v557 = vsel %vm544, 0.125, 0.0
    %v558 = vsel %vm545, 0.125, 0.0
    %v559 = vsel %vm546, 0.125, 0.0
    %v560 = vsel %vm547, 0.125, 0.0
    %v561 = vsel %vm548, 0.125, 0.0
    %v562 = vadd.f32 %v518, %v549
    %v563 = vadd.f32 %v519, %v550
    %v564 = vadd.f32 %v520, %v551
    %v565 = vadd.f32 %v521, %v552
    %v566 = vadd.f32 %v522, %v553
    %v567 = vadd.f32 %v523, %v554
    %v568 = vadd.f32 %v524, %v555
    %v569 = vadd.f32 %v525, %v556
    %v570 = vadd.f32 %v526, %v557
    %v571 = vadd.f32 %v527, %v558
    %v572 = vadd.f32 %v528, %v559
    %v573 = vadd.f32 %v529, %v560
    %v574 = vadd.f32 %v530, %v561
    %575 = vst [vmem:[#allocation9] sm:$0xff] %v562
    %576 = vst [vmem:[#allocation9 + $0x8] sm:$0xff] %v563
    %577 = vst [vmem:[#allocation9 + $0x10] sm:$0xff] %v564
    %578 = vst [vmem:[#allocation9 + $0x18] sm:$0xff] %v565
    %579 = vst [vmem:[#allocation9 + $0x20] sm:$0xff] %v566
    %580 = vst [vmem:[#allocation9 + $0x28] sm:$0xff] %v567
    %581 = vst [vmem:[#allocation9 + $0x30] sm:$0xff] %v568
    %582 = vst [vmem:[#allocation9 + $0x38] sm:$0xff] %v569
    %583 = vst [vmem:[#allocation9 + $0x40] sm:$0xff] %v570
    %584 = vst [vmem:[#allocation9 + $0x48] sm:$0xff] %v571
    %585 = vst [vmem:[#allocation9 + $0x50] sm:$0xff] %v572
    %586 = vst [vmem:[#allocation9 + $0x58] sm:$0xff] %v573
    %587 = vst [vmem:[#allocation9 + $0x60] sm:$0xf] %v574
    %s588 = sld [smem:[#allocation2]]
    %v589 = vstv %s588
    %590 = vst [vmem:[#allocation11] sm:$0x1] %v589
    %vm604 = vcmask 1040384
    %v605 = vrot.slane %v562, 7
    %v606 = vrot.slane %v563, 7
    %v607 = vsel %vm604, %v605, %v606
    %v608 = vrot.slane %v564, 7
    %v609 = vsel %vm604, %v606, %v608
    %v610 = vrot.slane %v565, 7
    %v611 = vsel %vm604, %v608, %v610
    %v612 = vrot.slane %v566, 7
    %v613 = vsel %vm604, %v610, %v612
    %v614 = vrot.slane %v567, 7
    %v615 = vsel %vm604, %v612, %v614
    %v616 = vrot.slane %v568, 7
    %v617 = vsel %vm604, %v614, %v616
    %v618 = vrot.slane %v569, 7
    %v619 = vsel %vm604, %v616, %v618
    %v620 = vrot.slane %v570, 7
    %v621 = vsel %vm604, %v618, %v620
    %v622 = vrot.slane %v571, 7
    %v623 = vsel %vm604, %v620, %v622
    %v624 = vrot.slane %v572, 7
    %v625 = vsel %vm604, %v622, %v624
    %v626 = vrot.slane %v573, 7
    %v627 = vsel %vm604, %v624, %v626
    %v628 = vrot.slane %v574, 7
    %v629 = vsel %vm604, %v626, %v628
    %v643 = vsub.f32 %v562, %v605
    %v644 = vsub.f32 %v563, %v607
    %v645 = vsub.f32 %v564, %v609
    %v646 = vsub.f32 %v565, %v611
    %v647 = vsub.f32 %v566, %v613
    %v648 = vsub.f32 %v567, %v615
    %v649 = vsub.f32 %v568, %v617
    %v650 = vsub.f32 %v569, %v619
    %v651 = vsub.f32 %v570, %v621
    %v652 = vsub.f32 %v571, %v623
    %v653 = vsub.f32 %v572, %v625
    %v654 = vsub.f32 %v573, %v627
    %v655 = vsub.f32 %v574, %v629
    %656 = vst [vmem:[#allocation11] sm:$0xfe] %v643
    %657 = vst [vmem:[#allocation11 + $0x8] sm:$0xff] %v644
    %658 = vst [vmem:[#allocation11 + $0x10] sm:$0xff] %v645
    %659 = vst [vmem:[#allocation11 + $0x18] sm:$0xff] %v646
    %660 = vst [vmem:[#allocation11 + $0x20] sm:$0xff] %v647
    %661 = vst [vmem:[#allocation11 + $0x28] sm:$0xff] %v648
    %662 = vst [vmem:[#allocation11 + $0x30] sm:$0xff] %v649
    %663 = vst [vmem:[#allocation11 + $0x38] sm:$0xff] %v650
    %664 = vst [vmem:[#allocation11 + $0x40] sm:$0xff] %v651
    %665 = vst [vmem:[#allocation11 + $0x48] sm:$0xff] %v652
    %666 = vst [vmem:[#allocation11 + $0x50] sm:$0xff] %v653
    %667 = vst [vmem:[#allocation11 + $0x58] sm:$0xff] %v654
    %668 = vst [vmem:[#allocation11 + $0x60] sm:$0xf] %v655
    // Predicated region
    $region22: #{tpu_custom_call.1} parent=1 // pred_check
      _
    $region23: #{tpu_custom_call.1} parent=1 // pred_check_branch
      %670 = sbr.rel (0) target = $region25
    $region24: #{tpu_custom_call.1} parent=1 // pred_region
      %s672 = ssub.s32 128, 128
      %673 = vsyncadd [#allocation5], %s672
      %s675 = sshll.u32 [#allocation8], 4
      %s676 = int_to_ptr.vmem [resolvable:$true] %s675
      %678 = dma.vmem_to_hbm [thread:$0]  %s676, 128, %s3, [#allocation5]
    $region25: #{tpu_custom_call.1} parent=1 // pred_fallthru
      _
    // Predicated region
    $region26: #{tpu_custom_call.1} parent=1 // pred_check
      _
    $region27: #{tpu_custom_call.1} parent=1 // pred_check_branch
      %680 = sbr.rel (0) target = $region29
    $region28: #{tpu_custom_call.1} parent=1 // pred_region
      %s682 = ssub.s32 1664, 1664
      %683 = vsyncadd [#allocation10], %s682
      %s684 = sshll.u32 [#allocation9], 4
      %s685 = int_to_ptr.vmem [resolvable:$true] %s684
      %690 = dma.vmem_to_hbm [thread:$0]  %s685, 1664, %s4, [#allocation10], 128, 128, 8
    $region29: #{tpu_custom_call.1} parent=1 // pred_fallthru
      _
    // Predicated region
    $region30: #{tpu_custom_call.1} parent=1 // pred_check
      _
    $region31: #{tpu_custom_call.1} parent=1 // pred_check_branch
      %692 = sbr.rel (0) target = $region33
    $region32: #{tpu_custom_call.1} parent=1 // pred_region
      %s694 = ssub.s32 1664, 1664
      %695 = vsyncadd [#allocation10], %s694
      %s696 = sshll.u32 [#allocation11], 4
      %s697 = int_to_ptr.vmem [resolvable:$true] %s696
      %702 = dma.vmem_to_hbm [thread:$0]  %s697, 1664, %s5, [#allocation10], 128, 128, 8
    $region33: #{tpu_custom_call.1} parent=1 // pred_fallthru
      _
    // Predicated region
    $region34: #{tpu_custom_call.1} parent=1 // pred_check
      _
    $region35: #{tpu_custom_call.1} parent=1 // pred_check_branch
      %704 = sbr.rel (0) target = $region37
    $region36: #{tpu_custom_call.1} parent=1 // pred_region
      %705 = dma.done [#allocation5], 128
    $region37: #{tpu_custom_call.1} parent=1 // pred_fallthru
      _
    // Predicated region
    $region38: #{tpu_custom_call.1} parent=1 // pred_check
      _
    $region39: #{tpu_custom_call.1} parent=1 // pred_check_branch
      %707 = sbr.rel (0) target = $region41
    $region40: #{tpu_custom_call.1} parent=1 // pred_region
      %708 = dma.done [#allocation10], 1664
    $region41: #{tpu_custom_call.1} parent=1 // pred_fallthru
      _
    // Predicated region
    $region42: #{tpu_custom_call.1} parent=1 // pred_check
      _
    $region43: #{tpu_custom_call.1} parent=1 // pred_check_branch
      %710 = sbr.rel (0) target = $region45
    $region44: #{tpu_custom_call.1} parent=1 // pred_region
      %711 = dma.done [#allocation10], 1664
    $region45: #{tpu_custom_call.1} parent=1 // pred_fallthru
      _
    %712 = vsyncpa [#allocation4], 1
    %713 = vsyncpa [#allocation7], 1
    %714 = vsyncpa [#allocation5], 1
    %715 = vsyncpa [#allocation10], 1

</llo_original>
